<compile_context>
chip_gen: v5e
topology: v5e:2x2
jax: 0.10.0
libtpu: 0.0.40
codegen_flags: <defaults>
</compile_context>

<pallas_src>
import functools

import jax
import jax.numpy as jnp
import numpy as np
from jax import lax
from jax.experimental import pallas as pl
from jax.experimental.pallas import tpu as pltpu


# ----------------------------------------------------------------------------
# Pallas kernel: in-kernel input projection + unrolled masked LSTM recurrence
# + fused mu/log_var head + reparametrisation, single invocation, VMEM
# resident, one lane-dense output store.
# ----------------------------------------------------------------------------
def _encoder_kernel(x_ref, wgate_ref, whead_ref, rl_ref, out_ref,
                    *, T, B, D, H, L, OUT_W):
    # Unpack the consolidated weight slab (row slices are sublane-aligned).
    w_ih = wgate_ref[0:D, :]               # (D, 4H), g-gate columns pre-scaled x2
    w_hh = wgate_ref[D:D + H, :]           # (H, 4H), g-gate columns pre-scaled x2
    b_g = wgate_ref[D + H:D + H + 1, :]    # (1, 4H), (b_ih+b_hh), g-cols x2

    rand = rl_ref[:, 0:L]                  # (B, L) uniform noise
    lengths = rl_ref[:, L:L + 1]           # (B, 1) lengths as f32 (exact ints)

    # Hoisted input projection for ALL timesteps, done inside the kernel:
    # one (T*B, D) x (D, 4H) MXU matmul.
    gx = jnp.dot(x_ref[...], w_ih, preferred_element_type=jnp.float32) + b_g

    h = jnp.zeros((B, H), jnp.float32)
    c = jnp.zeros((B, H), jnp.float32)

    # Statically unrolled time loop (T small & static): state stays in vregs,
    # static sublane-aligned gx row slices, full scheduler visibility.
    for t in range(T):
        # PyTorch LSTM gate layout along the 4H axis: [i, f, g, o].
        gates = gx[t * B:(t + 1) * B, :] + jnp.dot(
            h, w_hh, preferred_element_type=jnp.float32)
        acts = jax.nn.sigmoid(gates)                 # one full-vreg EUP pass
        i_g = acts[:, 0 * H:1 * H]
        f_g = acts[:, 1 * H:2 * H]
        g_g = 2.0 * acts[:, 2 * H:3 * H] - 1.0       # tanh via pre-scaled sigmoid
        o_g = acts[:, 3 * H:4 * H]

        c_new = f_g * c + i_g * g_g
        h_new = o_g * jnp.tanh(c_new)

        # pack_padded_sequence semantics: only advance state while t < length.
        keep = lengths > float(t)                    # (B, 1) bool
        h = jnp.where(keep, h_new, h)
        c = jnp.where(keep, c_new, c)

    # Fused heads: one (B,H) x (H,2L) matmul for [mu | log_var].
    heads = jnp.dot(h, whead_ref[0:H, :],
                    preferred_element_type=jnp.float32) + whead_ref[H:H + 1, :]
    mu = heads[:, 0:L]
    log_var = heads[:, L:2 * L]
    std = jnp.exp(0.5 * log_var)
    z = rand * std + mu

    # Single lane-dense store: [z | mu | std | h | c | pad] as one (B,128) slab.
    pad = OUT_W - (3 * L + 2 * H)
    out_ref[...] = jnp.concatenate(
        [z, mu, std, h, c, jnp.zeros((B, pad), jnp.float32)], axis=1)


def encoder_forward(x, lengths, rand_u, params):
    """Mirrors Encoder.forward for cell_type='lstm', n_layers=1, unidirectional.

    x:       (B, T, D) float32, batch_first like the PyTorch module.
    lengths: (B,) int32 valid lengths.
    rand_u:  (B, L) float32 uniform noise (stands in for torch.rand).
    Returns (z, mu, std, sorted_idx, (h_n, c_n)).
    """
    B, T, D = x.shape
    H = params["w_hh"].shape[0]
    L = params["w_mu"].shape[1]

    # Wrapper glue (matches the PyTorch forward prologue).
    # Note: jnp.argsort is stable; torch.sort(descending=True) need not be, so
    # tie ordering of sorted_idx may differ from PyTorch (outputs stay
    # self-consistent).
    sorted_idx = jnp.argsort(-lengths)
    x_sorted = x[sorted_idx]                               # (B, T, D)
    len_sorted = lengths[sorted_idx]

    # Time-major flatten so the kernel indexes each step as a contiguous
    # sublane-aligned row block.
    x_tm = jnp.transpose(x_sorted, (1, 0, 2)).reshape(T * B, D)

    # Fold the tanh-via-sigmoid trick into the weights once (constant fold):
    # scale the g-gate columns by 2 so tanh(x) = 2*sigmoid(2x) - 1 in-kernel.
    gate_scale = jnp.concatenate(
        [jnp.ones((1, 2 * H), jnp.float32),
         jnp.full((1, H), 2.0, jnp.float32),
         jnp.ones((1, H), jnp.float32)], axis=1)           # (1, 4H)

    w_ih_s = params["w_ih"] * gate_scale                   # (D, 4H)
    w_hh_s = params["w_hh"] * gate_scale                   # (H, 4H)
    b_s = (params["b_ih"] + params["b_hh"]) * gate_scale   # (1, 4H)

    # Consolidated input slabs (4 DMAs total).
    wgate = jnp.concatenate([w_ih_s, w_hh_s, b_s], axis=0)           # (D+H+1, 4H)
    whead = jnp.concatenate(
        [jnp.concatenate([params["w_mu"], params["w_lv"]], axis=1),
         jnp.concatenate([params["b_mu"], params["b_lv"]], axis=1)],
        axis=0)                                                       # (H+1, 2L)
    randlen = jnp.concatenate(
        [rand_u, len_sorted.astype(jnp.float32).reshape(B, 1)], axis=1)  # (B, L+1)

    OUT_W = ((3 * L + 2 * H + 127) // 128) * 128           # lane-dense slab width

    kernel = functools.partial(
        _encoder_kernel, T=T, B=B, D=D, H=H, L=L, OUT_W=OUT_W)

    packed = pl.pallas_call(
        kernel,
        out_shape=jax.ShapeDtypeStruct((B, OUT_W), jnp.float32),
        in_specs=[pl.BlockSpec(memory_space=pltpu.MemorySpace.VMEM)] * 4,
        out_specs=pl.BlockSpec(memory_space=pltpu.MemorySpace.VMEM),
    )(x_tm, wgate, whead, randlen)

    z = packed[:, 0 * L:1 * L]
    mu = packed[:, 1 * L:2 * L]
    std = packed[:, 2 * L:3 * L]
    h_n = packed[:, 3 * L:3 * L + H]
    c_n = packed[:, 3 * L + H:3 * L + 2 * H]

    # hidden = (h_n, c_n) with shape (n_layers * num_directions, B, H) = (1, B, H)
    hidden = (h_n[None], c_n[None])
    return z, mu, std, sorted_idx, hidden


# ----------------------------------------------------------------------------
# Pure-JAX reference (standard LSTM math, lax.scan) used only for verification.
# ----------------------------------------------------------------------------
def encoder_reference(x, lengths, rand_u, params):
    B, T, D = x.shape
    H = params["w_hh"].shape[0]
    sorted_idx = jnp.argsort(-lengths)
    x_s = x[sorted_idx]
    len_s = lengths[sorted_idx]

    def step(carry, inp):
        h, c = carry
        x_t, t = inp
        gates = (x_t @ params["w_ih"] + h @ params["w_hh"]
                 + params["b_ih"] + params["b_hh"])
        i_g = jax.nn.sigmoid(gates[:, 0 * H:1 * H])
        f_g = jax.nn.sigmoid(gates[:, 1 * H:2 * H])
        g_g = jnp.tanh(gates[:, 2 * H:3 * H])
        o_g = jax.nn.sigmoid(gates[:, 3 * H:4 * H])
        c_new = f_g * c + i_g * g_g
        h_new = o_g * jnp.tanh(c_new)
        m = (len_s > t)[:, None]
        return (jnp.where(m, h_new, h), jnp.where(m, c_new, c)), None

    (h, c), _ = lax.scan(
        step, (jnp.zeros((B, H)), jnp.zeros((B, H))),
        (jnp.transpose(x_s, (1, 0, 2)), jnp.arange(T)))
    mu = h @ params["w_mu"] + params["b_mu"]
    lv = h @ params["w_lv"] + params["b_lv"]
    std = jnp.exp(0.5 * lv)
    z = rand_u * std + mu
    return z, mu, std, sorted_idx, (h[None], c[None])


def init_params(key, input_dim, hidden_dim, latent_dim):
    """Deterministic synthetic parameters (PyTorch-style uniform init)."""
    k = 1.0 / np.sqrt(hidden_dim)
    ks = jax.random.split(key, 8)
    u = lambda kk, shape, bound: jax.random.uniform(
        kk, shape, jnp.float32, minval=-bound, maxval=bound)
    return {
        # Stored pre-transposed: (in_features, out_features).
        "w_ih": u(ks[0], (input_dim, 4 * hidden_dim), k),
        "w_hh": u(ks[1], (hidden_dim, 4 * hidden_dim), k),
        "b_ih": u(ks[2], (1, 4 * hidden_dim), k),
        "b_hh": u(ks[3], (1, 4 * hidden_dim), k),
        "w_mu": u(ks[4], (hidden_dim, latent_dim), k),
        "b_mu": u(ks[5], (1, latent_dim), k),
        "w_lv": u(ks[6], (hidden_dim, latent_dim), k),
        "b_lv": u(ks[7], (1, latent_dim), k),
    }


if __name__ == "__main__":
    # Small shapes consistent with the module.
    B, T, D, H, L = 8, 6, 16, 32, 16

    key = jax.random.PRNGKey(0)
    k_x, k_r, k_p = jax.random.split(key, 3)

    x = jax.random.normal(k_x, (B, T, D), dtype=jnp.float32)
    lengths = jnp.array([6, 3, 5, 2, 6, 4, 1, 3], dtype=jnp.int32)
    rand_u = jax.random.uniform(k_r, (B, L), dtype=jnp.float32)  # torch.rand stand-in
    params = init_params(k_p, D, H, L)

    z, mu, std, sorted_idx, (h_n, c_n) = jax.block_until_ready(
        encoder_forward(x, lengths, rand_u, params))

    # Sanity check against the pure-JAX reference.
    z_r, mu_r, std_r, idx_r, (h_r, c_r) = encoder_reference(
        x, lengths, rand_u, params)
    assert jnp.allclose(z, z_r, atol=1e-4), "z mismatch"
    assert jnp.allclose(mu, mu_r, atol=1e-4), "mu mismatch"
    assert jnp.allclose(std, std_r, atol=1e-4), "std mismatch"
    assert jnp.allclose(h_n, h_r, atol=1e-4), "h_n mismatch"
    assert jnp.allclose(c_n, c_r, atol=1e-4), "c_n mismatch"
    assert bool(jnp.all(sorted_idx == idx_r)), "sorted_idx mismatch"

    print("KERNEL_OK")
</pallas_src>

<mosaic_0001>
module attributes {stable_mosaic.version = 11 : i64} {
  func.func @_encoder_kernel(%arg0: memref<48x16xf32, #tpu.memory_space<vmem>>, %arg1: memref<49x128xf32, #tpu.memory_space<vmem>>, %arg2: memref<33x32xf32, #tpu.memory_space<vmem>>, %arg3: memref<8x17xf32, #tpu.memory_space<vmem>>, %arg4: memref<8x128xf32, #tpu.memory_space<vmem>>) attributes {dimension_semantics = [], scalar_prefetch = 0 : i64, scratch_operands = 0 : i64, tpu.core_type = #tpu.core_type<tc>} {
    %c0 = arith.constant 0 : index
    %c0_0 = arith.constant 0 : index
    %0 = vector.load %arg1[%c0, %c0_0] : memref<49x128xf32, #tpu.memory_space<vmem>>, vector<16x128xf32>
    %c16 = arith.constant 16 : index
    %c0_1 = arith.constant 0 : index
    %1 = vector.load %arg1[%c16, %c0_1] : memref<49x128xf32, #tpu.memory_space<vmem>>, vector<32x128xf32>
    %c48 = arith.constant 48 : index
    %c0_2 = arith.constant 0 : index
    %2 = vector.load %arg1[%c48, %c0_2] : memref<49x128xf32, #tpu.memory_space<vmem>>, vector<1x128xf32>
    %c0_3 = arith.constant 0 : index
    %c0_4 = arith.constant 0 : index
    %3 = vector.load %arg3[%c0_3, %c0_4] : memref<8x17xf32, #tpu.memory_space<vmem>>, vector<8x16xf32>
    %c0_5 = arith.constant 0 : index
    %c16_6 = arith.constant 16 : index
    %4 = vector.load %arg3[%c0_5, %c16_6] : memref<8x17xf32, #tpu.memory_space<vmem>>, vector<8x1xf32>
    %c0_7 = arith.constant 0 : index
    %c0_8 = arith.constant 0 : index
    %5 = vector.load %arg0[%c0_7, %c0_8] : memref<48x16xf32, #tpu.memory_space<vmem>>, vector<48x16xf32>
    %cst = arith.constant dense<0.000000e+00> : vector<48x128xf32>
    %6 = tpu.matmul %5, %0, %cst {dimension_numbers = #tpu.dot_dimension_numbers<[1], [0], [0], [1], [0, 0, 1, 1], [], []>} : vector<48x16xf32>, vector<16x128xf32>, vector<48x128xf32> -> vector<48x128xf32>
    %7 = vector.broadcast %2 : vector<1x128xf32> to vector<48x128xf32>
    %8 = arith.addf %6, %7 : vector<48x128xf32>
    %cst_9 = arith.constant 0.000000e+00 : f32
    %9 = vector.broadcast %cst_9 : f32 to vector<8x32xf32>
    %cst_10 = arith.constant 0.000000e+00 : f32
    %10 = vector.broadcast %cst_10 : f32 to vector<8x32xf32>
    %11 = vector.extract_strided_slice %8 {offsets = [0, 0], sizes = [8, 128], strides = [1, 1]} : vector<48x128xf32> to vector<8x128xf32>
    %cst_11 = arith.constant dense<0.000000e+00> : vector<8x128xf32>
    %12 = tpu.matmul %9, %1, %cst_11 {dimension_numbers = #tpu.dot_dimension_numbers<[1], [0], [0], [1], [0, 0, 1, 1], [], []>} : vector<8x32xf32>, vector<32x128xf32>, vector<8x128xf32> -> vector<8x128xf32>
    %13 = arith.addf %11, %12 : vector<8x128xf32>
    %14 = arith.negf %13 : vector<8x128xf32>
    %15 = math.exp %14 : vector<8x128xf32>
    %cst_12 = arith.constant 1.000000e+00 : f32
    %16 = vector.broadcast %cst_12 : f32 to vector<8x128xf32>
    %17 = arith.addf %16, %15 : vector<8x128xf32>
    %18 = arith.divf %16, %17 : vector<8x128xf32>
    %19 = vector.extract_strided_slice %18 {offsets = [0, 0], sizes = [8, 32], strides = [1, 1]} : vector<8x128xf32> to vector<8x32xf32>
    %20 = vector.extract_strided_slice %18 {offsets = [0, 32], sizes = [8, 32], strides = [1, 1]} : vector<8x128xf32> to vector<8x32xf32>
    %21 = vector.extract_strided_slice %18 {offsets = [0, 64], sizes = [8, 32], strides = [1, 1]} : vector<8x128xf32> to vector<8x32xf32>
    %cst_13 = arith.constant 2.000000e+00 : f32
    %22 = vector.broadcast %cst_13 : f32 to vector<8x32xf32>
    %23 = arith.mulf %22, %21 : vector<8x32xf32>
    %cst_14 = arith.constant 1.000000e+00 : f32
    %24 = vector.broadcast %cst_14 : f32 to vector<8x32xf32>
    %25 = arith.subf %23, %24 : vector<8x32xf32>
    %26 = vector.extract_strided_slice %18 {offsets = [0, 96], sizes = [8, 32], strides = [1, 1]} : vector<8x128xf32> to vector<8x32xf32>
    %27 = arith.mulf %20, %10 : vector<8x32xf32>
    %28 = arith.mulf %19, %25 : vector<8x32xf32>
    %29 = arith.addf %27, %28 : vector<8x32xf32>
    %30 = math.tanh %29 : vector<8x32xf32>
    %31 = arith.mulf %26, %30 : vector<8x32xf32>
    %cst_15 = arith.constant 0.000000e+00 : f32
    %32 = vector.broadcast %cst_15 : f32 to vector<8x1xf32>
    %33 = arith.cmpf ogt, %4, %32 : vector<8x1xf32>
    %34 = vector.shape_cast %33 : vector<8x1xi1> to vector<8x1xi1>
    %35 = vector.broadcast %34 : vector<8x1xi1> to vector<8x32xi1>
    %36 = arith.select %35, %31, %9 : vector<8x32xi1>, vector<8x32xf32>
    %37 = vector.shape_cast %33 : vector<8x1xi1> to vector<8x1xi1>
    %38 = vector.broadcast %37 : vector<8x1xi1> to vector<8x32xi1>
    %39 = arith.select %38, %29, %10 : vector<8x32xi1>, vector<8x32xf32>
    %40 = vector.extract_strided_slice %8 {offsets = [8, 0], sizes = [8, 128], strides = [1, 1]} : vector<48x128xf32> to vector<8x128xf32>
    %cst_16 = arith.constant dense<0.000000e+00> : vector<8x128xf32>
    %41 = tpu.matmul %36, %1, %cst_16 {dimension_numbers = #tpu.dot_dimension_numbers<[1], [0], [0], [1], [0, 0, 1, 1], [], []>} : vector<8x32xf32>, vector<32x128xf32>, vector<8x128xf32> -> vector<8x128xf32>
    %42 = arith.addf %40, %41 : vector<8x128xf32>
    %43 = arith.negf %42 : vector<8x128xf32>
    %44 = math.exp %43 : vector<8x128xf32>
    %cst_17 = arith.constant 1.000000e+00 : f32
    %45 = vector.broadcast %cst_17 : f32 to vector<8x128xf32>
    %46 = arith.addf %45, %44 : vector<8x128xf32>
    %47 = arith.divf %45, %46 : vector<8x128xf32>
    %48 = vector.extract_strided_slice %47 {offsets = [0, 0], sizes = [8, 32], strides = [1, 1]} : vector<8x128xf32> to vector<8x32xf32>
    %49 = vector.extract_strided_slice %47 {offsets = [0, 32], sizes = [8, 32], strides = [1, 1]} : vector<8x128xf32> to vector<8x32xf32>
    %50 = vector.extract_strided_slice %47 {offsets = [0, 64], sizes = [8, 32], strides = [1, 1]} : vector<8x128xf32> to vector<8x32xf32>
    %cst_18 = arith.constant 2.000000e+00 : f32
    %51 = vector.broadcast %cst_18 : f32 to vector<8x32xf32>
    %52 = arith.mulf %51, %50 : vector<8x32xf32>
    %cst_19 = arith.constant 1.000000e+00 : f32
    %53 = vector.broadcast %cst_19 : f32 to vector<8x32xf32>
    %54 = arith.subf %52, %53 : vector<8x32xf32>
    %55 = vector.extract_strided_slice %47 {offsets = [0, 96], sizes = [8, 32], strides = [1, 1]} : vector<8x128xf32> to vector<8x32xf32>
    %56 = arith.mulf %49, %39 : vector<8x32xf32>
    %57 = arith.mulf %48, %54 : vector<8x32xf32>
    %58 = arith.addf %56, %57 : vector<8x32xf32>
    %59 = math.tanh %58 : vector<8x32xf32>
    %60 = arith.mulf %55, %59 : vector<8x32xf32>
    %cst_20 = arith.constant 1.000000e+00 : f32
    %61 = vector.broadcast %cst_20 : f32 to vector<8x1xf32>
    %62 = arith.cmpf ogt, %4, %61 : vector<8x1xf32>
    %63 = vector.shape_cast %62 : vector<8x1xi1> to vector<8x1xi1>
    %64 = vector.broadcast %63 : vector<8x1xi1> to vector<8x32xi1>
    %65 = arith.select %64, %60, %36 : vector<8x32xi1>, vector<8x32xf32>
    %66 = vector.shape_cast %62 : vector<8x1xi1> to vector<8x1xi1>
    %67 = vector.broadcast %66 : vector<8x1xi1> to vector<8x32xi1>
    %68 = arith.select %67, %58, %39 : vector<8x32xi1>, vector<8x32xf32>
    %69 = vector.extract_strided_slice %8 {offsets = [16, 0], sizes = [8, 128], strides = [1, 1]} : vector<48x128xf32> to vector<8x128xf32>
    %cst_21 = arith.constant dense<0.000000e+00> : vector<8x128xf32>
    %70 = tpu.matmul %65, %1, %cst_21 {dimension_numbers = #tpu.dot_dimension_numbers<[1], [0], [0], [1], [0, 0, 1, 1], [], []>} : vector<8x32xf32>, vector<32x128xf32>, vector<8x128xf32> -> vector<8x128xf32>
    %71 = arith.addf %69, %70 : vector<8x128xf32>
    %72 = arith.negf %71 : vector<8x128xf32>
    %73 = math.exp %72 : vector<8x128xf32>
    %cst_22 = arith.constant 1.000000e+00 : f32
    %74 = vector.broadcast %cst_22 : f32 to vector<8x128xf32>
    %75 = arith.addf %74, %73 : vector<8x128xf32>
    %76 = arith.divf %74, %75 : vector<8x128xf32>
    %77 = vector.extract_strided_slice %76 {offsets = [0, 0], sizes = [8, 32], strides = [1, 1]} : vector<8x128xf32> to vector<8x32xf32>
    %78 = vector.extract_strided_slice %76 {offsets = [0, 32], sizes = [8, 32], strides = [1, 1]} : vector<8x128xf32> to vector<8x32xf32>
    %79 = vector.extract_strided_slice %76 {offsets = [0, 64], sizes = [8, 32], strides = [1, 1]} : vector<8x128xf32> to vector<8x32xf32>
    %cst_23 = arith.constant 2.000000e+00 : f32
    %80 = vector.broadcast %cst_23 : f32 to vector<8x32xf32>
    %81 = arith.mulf %80, %79 : vector<8x32xf32>
    %cst_24 = arith.constant 1.000000e+00 : f32
    %82 = vector.broadcast %cst_24 : f32 to vector<8x32xf32>
    %83 = arith.subf %81, %82 : vector<8x32xf32>
    %84 = vector.extract_strided_slice %76 {offsets = [0, 96], sizes = [8, 32], strides = [1, 1]} : vector<8x128xf32> to vector<8x32xf32>
    %85 = arith.mulf %78, %68 : vector<8x32xf32>
    %86 = arith.mulf %77, %83 : vector<8x32xf32>
    %87 = arith.addf %85, %86 : vector<8x32xf32>
    %88 = math.tanh %87 : vector<8x32xf32>
    %89 = arith.mulf %84, %88 : vector<8x32xf32>
    %cst_25 = arith.constant 2.000000e+00 : f32
    %90 = vector.broadcast %cst_25 : f32 to vector<8x1xf32>
    %91 = arith.cmpf ogt, %4, %90 : vector<8x1xf32>
    %92 = vector.shape_cast %91 : vector<8x1xi1> to vector<8x1xi1>
    %93 = vector.broadcast %92 : vector<8x1xi1> to vector<8x32xi1>
    %94 = arith.select %93, %89, %65 : vector<8x32xi1>, vector<8x32xf32>
    %95 = vector.shape_cast %91 : vector<8x1xi1> to vector<8x1xi1>
    %96 = vector.broadcast %95 : vector<8x1xi1> to vector<8x32xi1>
    %97 = arith.select %96, %87, %68 : vector<8x32xi1>, vector<8x32xf32>
    %98 = vector.extract_strided_slice %8 {offsets = [24, 0], sizes = [8, 128], strides = [1, 1]} : vector<48x128xf32> to vector<8x128xf32>
    %cst_26 = arith.constant dense<0.000000e+00> : vector<8x128xf32>
    %99 = tpu.matmul %94, %1, %cst_26 {dimension_numbers = #tpu.dot_dimension_numbers<[1], [0], [0], [1], [0, 0, 1, 1], [], []>} : vector<8x32xf32>, vector<32x128xf32>, vector<8x128xf32> -> vector<8x128xf32>
    %100 = arith.addf %98, %99 : vector<8x128xf32>
    %101 = arith.negf %100 : vector<8x128xf32>
    %102 = math.exp %101 : vector<8x128xf32>
    %cst_27 = arith.constant 1.000000e+00 : f32
    %103 = vector.broadcast %cst_27 : f32 to vector<8x128xf32>
    %104 = arith.addf %103, %102 : vector<8x128xf32>
    %105 = arith.divf %103, %104 : vector<8x128xf32>
    %106 = vector.extract_strided_slice %105 {offsets = [0, 0], sizes = [8, 32], strides = [1, 1]} : vector<8x128xf32> to vector<8x32xf32>
    %107 = vector.extract_strided_slice %105 {offsets = [0, 32], sizes = [8, 32], strides = [1, 1]} : vector<8x128xf32> to vector<8x32xf32>
    %108 = vector.extract_strided_slice %105 {offsets = [0, 64], sizes = [8, 32], strides = [1, 1]} : vector<8x128xf32> to vector<8x32xf32>
    %cst_28 = arith.constant 2.000000e+00 : f32
    %109 = vector.broadcast %cst_28 : f32 to vector<8x32xf32>
    %110 = arith.mulf %109, %108 : vector<8x32xf32>
    %cst_29 = arith.constant 1.000000e+00 : f32
    %111 = vector.broadcast %cst_29 : f32 to vector<8x32xf32>
    %112 = arith.subf %110, %111 : vector<8x32xf32>
    %113 = vector.extract_strided_slice %105 {offsets = [0, 96], sizes = [8, 32], strides = [1, 1]} : vector<8x128xf32> to vector<8x32xf32>
    %114 = arith.mulf %107, %97 : vector<8x32xf32>
    %115 = arith.mulf %106, %112 : vector<8x32xf32>
    %116 = arith.addf %114, %115 : vector<8x32xf32>
    %117 = math.tanh %116 : vector<8x32xf32>
    %118 = arith.mulf %113, %117 : vector<8x32xf32>
    %cst_30 = arith.constant 3.000000e+00 : f32
    %119 = vector.broadcast %cst_30 : f32 to vector<8x1xf32>
    %120 = arith.cmpf ogt, %4, %119 : vector<8x1xf32>
    %121 = vector.shape_cast %120 : vector<8x1xi1> to vector<8x1xi1>
    %122 = vector.broadcast %121 : vector<8x1xi1> to vector<8x32xi1>
    %123 = arith.select %122, %118, %94 : vector<8x32xi1>, vector<8x32xf32>
    %124 = vector.shape_cast %120 : vector<8x1xi1> to vector<8x1xi1>
    %125 = vector.broadcast %124 : vector<8x1xi1> to vector<8x32xi1>
    %126 = arith.select %125, %116, %97 : vector<8x32xi1>, vector<8x32xf32>
    %127 = vector.extract_strided_slice %8 {offsets = [32, 0], sizes = [8, 128], strides = [1, 1]} : vector<48x128xf32> to vector<8x128xf32>
    %cst_31 = arith.constant dense<0.000000e+00> : vector<8x128xf32>
    %128 = tpu.matmul %123, %1, %cst_31 {dimension_numbers = #tpu.dot_dimension_numbers<[1], [0], [0], [1], [0, 0, 1, 1], [], []>} : vector<8x32xf32>, vector<32x128xf32>, vector<8x128xf32> -> vector<8x128xf32>
    %129 = arith.addf %127, %128 : vector<8x128xf32>
    %130 = arith.negf %129 : vector<8x128xf32>
    %131 = math.exp %130 : vector<8x128xf32>
    %cst_32 = arith.constant 1.000000e+00 : f32
    %132 = vector.broadcast %cst_32 : f32 to vector<8x128xf32>
    %133 = arith.addf %132, %131 : vector<8x128xf32>
    %134 = arith.divf %132, %133 : vector<8x128xf32>
    %135 = vector.extract_strided_slice %134 {offsets = [0, 0], sizes = [8, 32], strides = [1, 1]} : vector<8x128xf32> to vector<8x32xf32>
    %136 = vector.extract_strided_slice %134 {offsets = [0, 32], sizes = [8, 32], strides = [1, 1]} : vector<8x128xf32> to vector<8x32xf32>
    %137 = vector.extract_strided_slice %134 {offsets = [0, 64], sizes = [8, 32], strides = [1, 1]} : vector<8x128xf32> to vector<8x32xf32>
    %cst_33 = arith.constant 2.000000e+00 : f32
    %138 = vector.broadcast %cst_33 : f32 to vector<8x32xf32>
    %139 = arith.mulf %138, %137 : vector<8x32xf32>
    %cst_34 = arith.constant 1.000000e+00 : f32
    %140 = vector.broadcast %cst_34 : f32 to vector<8x32xf32>
    %141 = arith.subf %139, %140 : vector<8x32xf32>
    %142 = vector.extract_strided_slice %134 {offsets = [0, 96], sizes = [8, 32], strides = [1, 1]} : vector<8x128xf32> to vector<8x32xf32>
    %143 = arith.mulf %136, %126 : vector<8x32xf32>
    %144 = arith.mulf %135, %141 : vector<8x32xf32>
    %145 = arith.addf %143, %144 : vector<8x32xf32>
    %146 = math.tanh %145 : vector<8x32xf32>
    %147 = arith.mulf %142, %146 : vector<8x32xf32>
    %cst_35 = arith.constant 4.000000e+00 : f32
    %148 = vector.broadcast %cst_35 : f32 to vector<8x1xf32>
    %149 = arith.cmpf ogt, %4, %148 : vector<8x1xf32>
    %150 = vector.shape_cast %149 : vector<8x1xi1> to vector<8x1xi1>
    %151 = vector.broadcast %150 : vector<8x1xi1> to vector<8x32xi1>
    %152 = arith.select %151, %147, %123 : vector<8x32xi1>, vector<8x32xf32>
    %153 = vector.shape_cast %149 : vector<8x1xi1> to vector<8x1xi1>
    %154 = vector.broadcast %153 : vector<8x1xi1> to vector<8x32xi1>
    %155 = arith.select %154, %145, %126 : vector<8x32xi1>, vector<8x32xf32>
    %156 = vector.extract_strided_slice %8 {offsets = [40, 0], sizes = [8, 128], strides = [1, 1]} : vector<48x128xf32> to vector<8x128xf32>
    %cst_36 = arith.constant dense<0.000000e+00> : vector<8x128xf32>
    %157 = tpu.matmul %152, %1, %cst_36 {dimension_numbers = #tpu.dot_dimension_numbers<[1], [0], [0], [1], [0, 0, 1, 1], [], []>} : vector<8x32xf32>, vector<32x128xf32>, vector<8x128xf32> -> vector<8x128xf32>
    %158 = arith.addf %156, %157 : vector<8x128xf32>
    %159 = arith.negf %158 : vector<8x128xf32>
    %160 = math.exp %159 : vector<8x128xf32>
    %cst_37 = arith.constant 1.000000e+00 : f32
    %161 = vector.broadcast %cst_37 : f32 to vector<8x128xf32>
    %162 = arith.addf %161, %160 : vector<8x128xf32>
    %163 = arith.divf %161, %162 : vector<8x128xf32>
    %164 = vector.extract_strided_slice %163 {offsets = [0, 0], sizes = [8, 32], strides = [1, 1]} : vector<8x128xf32> to vector<8x32xf32>
    %165 = vector.extract_strided_slice %163 {offsets = [0, 32], sizes = [8, 32], strides = [1, 1]} : vector<8x128xf32> to vector<8x32xf32>
    %166 = vector.extract_strided_slice %163 {offsets = [0, 64], sizes = [8, 32], strides = [1, 1]} : vector<8x128xf32> to vector<8x32xf32>
    %cst_38 = arith.constant 2.000000e+00 : f32
    %167 = vector.broadcast %cst_38 : f32 to vector<8x32xf32>
    %168 = arith.mulf %167, %166 : vector<8x32xf32>
    %cst_39 = arith.constant 1.000000e+00 : f32
    %169 = vector.broadcast %cst_39 : f32 to vector<8x32xf32>
    %170 = arith.subf %168, %169 : vector<8x32xf32>
    %171 = vector.extract_strided_slice %163 {offsets = [0, 96], sizes = [8, 32], strides = [1, 1]} : vector<8x128xf32> to vector<8x32xf32>
    %172 = arith.mulf %165, %155 : vector<8x32xf32>
    %173 = arith.mulf %164, %170 : vector<8x32xf32>
    %174 = arith.addf %172, %173 : vector<8x32xf32>
    %175 = math.tanh %174 : vector<8x32xf32>
    %176 = arith.mulf %171, %175 : vector<8x32xf32>
    %cst_40 = arith.constant 5.000000e+00 : f32
    %177 = vector.broadcast %cst_40 : f32 to vector<8x1xf32>
    %178 = arith.cmpf ogt, %4, %177 : vector<8x1xf32>
    %179 = vector.shape_cast %178 : vector<8x1xi1> to vector<8x1xi1>
    %180 = vector.broadcast %179 : vector<8x1xi1> to vector<8x32xi1>
    %181 = arith.select %180, %176, %152 : vector<8x32xi1>, vector<8x32xf32>
    %182 = vector.shape_cast %178 : vector<8x1xi1> to vector<8x1xi1>
    %183 = vector.broadcast %182 : vector<8x1xi1> to vector<8x32xi1>
    %184 = arith.select %183, %174, %155 : vector<8x32xi1>, vector<8x32xf32>
    %c0_41 = arith.constant 0 : index
    %c0_42 = arith.constant 0 : index
    %185 = vector.load %arg2[%c0_41, %c0_42] : memref<33x32xf32, #tpu.memory_space<vmem>>, vector<32x32xf32>
    %cst_43 = arith.constant dense<0.000000e+00> : vector<8x32xf32>
    %186 = tpu.matmul %181, %185, %cst_43 {dimension_numbers = #tpu.dot_dimension_numbers<[1], [0], [0], [1], [0, 0, 1, 1], [], []>} : vector<8x32xf32>, vector<32x32xf32>, vector<8x32xf32> -> vector<8x32xf32>
    %c32 = arith.constant 32 : index
    %c0_44 = arith.constant 0 : index
    %187 = vector.load %arg2[%c32, %c0_44] : memref<33x32xf32, #tpu.memory_space<vmem>>, vector<1x32xf32>
    %188 = vector.broadcast %187 : vector<1x32xf32> to vector<8x32xf32>
    %189 = arith.addf %186, %188 : vector<8x32xf32>
    %190 = vector.extract_strided_slice %189 {offsets = [0, 0], sizes = [8, 16], strides = [1, 1]} : vector<8x32xf32> to vector<8x16xf32>
    %191 = vector.extract_strided_slice %189 {offsets = [0, 16], sizes = [8, 16], strides = [1, 1]} : vector<8x32xf32> to vector<8x16xf32>
    %cst_45 = arith.constant 5.000000e-01 : f32
    %192 = vector.broadcast %cst_45 : f32 to vector<8x16xf32>
    %193 = arith.mulf %192, %191 : vector<8x16xf32>
    %194 = math.exp %193 : vector<8x16xf32>
    %195 = arith.mulf %3, %194 : vector<8x16xf32>
    %196 = arith.addf %195, %190 : vector<8x16xf32>
    %cst_46 = arith.constant 0.000000e+00 : f32
    %197 = vector.broadcast %cst_46 : f32 to vector<8x16xf32>
    %198 = tpu.concatenate %196, %190, %194, %181, %184, %197 in 1 : vector<8x16xf32>, vector<8x16xf32>, vector<8x16xf32>, vector<8x32xf32>, vector<8x32xf32>, vector<8x16xf32> -> vector<8x128xf32>
    %c0_47 = arith.constant 0 : index
    %c0_48 = arith.constant 0 : index
    %199 = vector.load %arg4[%c0_47, %c0_48] : memref<8x128xf32, #tpu.memory_space<vmem>>, vector<8x128xf32>
    tpu.vector_store %arg4[%c0_47, %c0_48], %198 {strides = array<i32>} : memref<8x128xf32, #tpu.memory_space<vmem>>, vector<8x128xf32>,
    return
  }
}

</mosaic_0001>

<llo_original>
// kernel: tpu_custom_call.1
$region0: #{tpu_custom_call.1}
  #allocation0 [shape = 'u32[]', space=smem, size = 0x4, offset = 0x4, fixed_abs, tag = 'smem constant byte address 0x4 - core index']
  #allocation1 [shape = 'u32[72,128]{1,0:T(1,128)}', space=vmem, size = 0x9000, scoped, tag = 'internal scratch']
  %s0 = inlined_call_operand.vmem [shape: f32[48,16], index: 0, kind: input, shape index: {}]
  %s1 = inlined_call_operand.vmem [shape: f32[49,128], index: 1, kind: input, shape index: {}]
  %s2 = inlined_call_operand.vmem [shape: f32[33,32], index: 2, kind: input, shape index: {}]
  %s3 = inlined_call_operand.vmem [shape: f32[8,17], index: 3, kind: input, shape index: {}]
  %s4 = inlined_call_operand.hbm [shape: f32[8,128], index: 4, kind: output, shape index: {}]
  %s5 = sld [smem:[#allocation0]]
  $region26: #{tpu_custom_call.1} parent=0
    _
  %s7 = ssub.s32 1, %s5
  %s8 = scalar_select 0, %s7, %s5
  $region1: #{tpu_custom_call.1} parent=0
    #allocation2 [shape = 'u8[4096]{0}', space=vmem, size = 0x1000, scoped, tag = 'output window, operand 0, single buffered']
    #allocation3 [shape = 's32[1]{0}', space=sflag, size = 0x4, scoped, tag = 'scoped memory for tpu_custom_call.1']
    %9 = vsyncpa [#allocation3], 0
    // Predicated region
    $region2: #{tpu_custom_call.1} parent=1 // pred_check
      _
    $region3: #{tpu_custom_call.1} parent=1 // pred_check_branch
      %11 = sbr.rel (0) target = $region5
    $region4: #{tpu_custom_call.1} parent=1 // pred_region
      _
    $region5: #{tpu_custom_call.1} parent=1 // pred_fallthru
      _
    // Predicated region
    $region6: #{tpu_custom_call.1} parent=1 // pred_check
      _
    $region7: #{tpu_custom_call.1} parent=1 // pred_check_branch
      %13 = sbr.rel (0) target = $region9
    $region8: #{tpu_custom_call.1} parent=1 // pred_region
      _
    $region9: #{tpu_custom_call.1} parent=1 // pred_fallthru
      _
    // Predicated region
    $region10: #{tpu_custom_call.1} parent=1 // pred_check
      _
    $region11: #{tpu_custom_call.1} parent=1 // pred_check_branch
      %15 = sbr.rel (0) target = $region13
    $region12: #{tpu_custom_call.1} parent=1 // pred_region
      _
    $region13: #{tpu_custom_call.1} parent=1 // pred_fallthru
      _
    // Predicated region
    $region14: #{tpu_custom_call.1} parent=1 // pred_check
      _
    $region15: #{tpu_custom_call.1} parent=1 // pred_check_branch
      %17 = sbr.rel (0) target = $region17
    $region16: #{tpu_custom_call.1} parent=1 // pred_region
      _
    $region17: #{tpu_custom_call.1} parent=1 // pred_fallthru
      _
    %v18 = vld [vmem:[%s1] sm:$0xff]
    %v19 = vld [vmem:[%s1 + $0x8] sm:$0xff]
    %v20 = vld [vmem:[%s1 + $0x10] sm:$0xff]
    %v21 = vld [vmem:[%s1 + $0x18] sm:$0xff]
    %v22 = vld [vmem:[%s1 + $0x20] sm:$0xff]
    %v23 = vld [vmem:[%s1 + $0x28] sm:$0xff]
    %v24 = vld [vmem:[%s1 + $0x30] sm:$0x1]
    %v25 = vld [vmem:[%s3] sm:$0xff]
    %v26 = vld [vmem:[%s0] sm:$0xff]
    %v27 = vld [vmem:[%s0 + $0x8] sm:$0xff]
    %v28 = vld [vmem:[%s0 + $0x10] sm:$0xff]
    %v29 = vld [vmem:[%s0 + $0x18] sm:$0xff]
    %v30 = vld [vmem:[%s0 + $0x20] sm:$0xff]
    %v31 = vld [vmem:[%s0 + $0x28] sm:$0xff]
    %v32 = vperm.slane %v24, 0
    %vm33 = vcmask 130048
    %v35 = vsel %vm33, %v26, 0
    %v38 = vsel %vm33, %v27, 0
    %v41 = vsel %vm33, %v28, 0
    %v44 = vsel %vm33, %v29, 0
    %v47 = vsel %vm33, %v30, 0
    %v50 = vsel %vm33, %v31, 0
    %52 = vmatpush.msra.mxu0 0.0
    %53 = vmatpush.msra.mxu0 0.0
    %54 = vmatpush.msra.mxu0 0.0
    %55 = vmatpush.msra.mxu0 0.0
    %56 = vmatpush.msra.mxu0 0.0
    %57 = vmatpush.msra.mxu0 0.0
    %58 = vmatpush.msra.mxu0 0.0
    %59 = vmatpush.msra.mxu0 0.0
    %60 = vmatpush.msra.mxu0 0.0
    %61 = vmatpush.msra.mxu0 0.0
    %62 = vmatpush.msra.mxu0 0.0
    %63 = vmatpush.msra.mxu0 0.0
    %64 = vmatpush.msra.mxu0 0.0
    %65 = vmatpush.msra.mxu0 0.0
    %66 = vmatpush.msra.mxu0 %v19
    %67 = vmatpush.msra.mxu0 %v18
    %68 = vmatmul.f32.gmra.mxu0 %v35
    %v69 = vpop.f32.mrf.mxu0
    %v70 = vadd.f32 %v32, %v69
    %71 = vmatmul.f32.gmra.mxu0 %v38
    %v72 = vpop.f32.mrf.mxu0
    %v73 = vadd.f32 %v32, %v72
    %74 = vmatmul.f32.gmra.mxu0 %v41
    %v75 = vpop.f32.mrf.mxu0
    %v76 = vadd.f32 %v32, %v75
    %77 = vmatmul.f32.gmra.mxu0 %v44
    %v78 = vpop.f32.mrf.mxu0
    %v79 = vadd.f32 %v32, %v78
    %80 = vmatmul.f32.gmra.mxu0 %v47
    %v81 = vpop.f32.mrf.mxu0
    %v82 = vadd.f32 %v32, %v81
    %83 = vmatmul.f32.gmra.mxu0 %v50
    %v84 = vpop.f32.mrf.mxu0
    %v85 = vadd.f32 %v32, %v84
    %86 = vdwg.mxu0
    %vm87 = vcmask 261120
    %v89 = vsel %vm87, 0.0, 0
    %91 = vmatpush.msra.mxu0 0.0
    %92 = vmatpush.msra.mxu0 0.0
    %93 = vmatpush.msra.mxu0 0.0
    %94 = vmatpush.msra.mxu0 0.0
    %95 = vmatpush.msra.mxu0 0.0
    %96 = vmatpush.msra.mxu0 0.0
    %97 = vmatpush.msra.mxu0 0.0
    %98 = vmatpush.msra.mxu0 0.0
    %99 = vmatpush.msra.mxu0 0.0
    %100 = vmatpush.msra.mxu0 0.0
    %101 = vmatpush.msra.mxu0 0.0
    %102 = vmatpush.msra.mxu0 0.0
    %103 = vmatpush.msra.mxu0 %v23
    %104 = vmatpush.msra.mxu0 %v22
    %105 = vmatpush.msra.mxu0 %v21
    %106 = vmatpush.msra.mxu0 %v20
    %107 = vmatmul.f32.gmra.mxu0 %v89
    %v108 = vpop.f32.mrf.mxu0
    %v109 = vadd.f32 0.0, %v108
    %110 = vdwg.mxu0
    %v111 = vadd.f32 %v70, %v109
    %v112 = vxor.u32 %v111, 2147483648
    %v113 = vmul.f32 %v112, 1.442695
    %v114 = vpow.pop %v113
    %v115 = vadd.f32 %v114, 1.0
    %v116 = vrcp.pop %v115
    %v117 = vmul.f32 %v115, %v116
    %v118 = vsub.f32 1.0, %v117
    %v119 = vmul.f32 %v116, %v118
    %v120 = vadd.f32 %v116, %v119
    %vm121 = vweird.f32 %v115
    %vm122 = vweird.f32 %v116
    %vm123 = vmor %vm121, %vm122
    %v124 = vsel %vm123, %v116, %v120
    %v125 = vand.u32 2147483647, %v115
    %vm126 = vcmp.eq.f32.partialorder %v125, 8.507059e+37
    %v127 = vand.u32 %v115, 2147483648
    %v128 = vor.u32 1.1754944e-38, %v127
    %v129 = vsel %vm126, %v128, %v124
    %v130 = vmul.f32 1.0, %v129
    %v131 = vmul.f32 %v130, 2.0
    %v132 = vsub.f32 %v131, 1.0
    %v133 = vmul.f32 %v130, 0.0
    %135 = vrot.lane.b32.xlu0 %v132, 64
    %v136 = vpop.permute.xlu0 %135
    %v138 = vmul.f32 %v130, %v136
    %140 = vrot.lane.b32.xlu0 %v138, 32
    %v141 = vpop.permute.xlu0 %140
    %v143 = vadd.f32 %v133, %v141
    %v144 = vtanh.pop %v143
    %146 = vrot.lane.b32.xlu0 %v144, 64
    %v147 = vpop.permute.xlu0 %146
    %v149 = vmul.f32 %v130, %v147
    %vm150 = vcmp.gt.f32.partialorder %v25, 0.0
    %v151 = vsel %vm150, 1, 0
    %152 = vset.pattern.permute.xlu0 16
    %153 = vperm.xlu0 %152, %v151
    %v154 = vpop.permute.xlu0 %153
    %vm155 = vcmp.eq.s32.totalorder %v154, 1
    %v156 = vsel %vm155, %v149, 0.0
    %v157 = vsel %vm155, %v143, 0.0
    %159 = vrot.lane.b32.xlu0 %v156, 32
    %v160 = vpop.permute.xlu0 %159
    %v161 = vsel %vm87, %v160, 0
    %163 = vmatpush.msra.mxu0 0.0
    %164 = vmatpush.msra.mxu0 0.0
    %165 = vmatpush.msra.mxu0 0.0
    %166 = vmatpush.msra.mxu0 0.0
    %167 = vmatpush.msra.mxu0 0.0
    %168 = vmatpush.msra.mxu0 0.0
    %169 = vmatpush.msra.mxu0 0.0
    %170 = vmatpush.msra.mxu0 0.0
    %171 = vmatpush.msra.mxu0 0.0
    %172 = vmatpush.msra.mxu0 0.0
    %173 = vmatpush.msra.mxu0 0.0
    %174 = vmatpush.msra.mxu0 0.0
    %175 = vmatpush.msra.mxu0 %v23
    %176 = vmatpush.msra.mxu0 %v22
    %177 = vmatpush.msra.mxu0 %v21
    %178 = vmatpush.msra.mxu0 %v20
    %179 = vmatmul.f32.gmra.mxu0 %v161
    %v180 = vpop.f32.mrf.mxu0
    %v181 = vadd.f32 0.0, %v180
    %182 = vdwg.mxu0
    %v183 = vadd.f32 %v73, %v181
    %v184 = vxor.u32 %v183, 2147483648
    %v185 = vmul.f32 %v184, 1.442695
    %v186 = vpow.pop %v185
    %v187 = vadd.f32 %v186, 1.0
    %v188 = vrcp.pop %v187
    %v189 = vmul.f32 %v187, %v188
    %v190 = vsub.f32 1.0, %v189
    %v191 = vmul.f32 %v188, %v190
    %v192 = vadd.f32 %v188, %v191
    %vm193 = vweird.f32 %v187
    %vm194 = vweird.f32 %v188
    %vm195 = vmor %vm193, %vm194
    %v196 = vsel %vm195, %v188, %v192
    %v197 = vand.u32 2147483647, %v187
    %vm198 = vcmp.eq.f32.partialorder %v197, 8.507059e+37
    %v199 = vand.u32 %v187, 2147483648
    %v200 = vor.u32 1.1754944e-38, %v199
    %v201 = vsel %vm198, %v200, %v196
    %v202 = vmul.f32 1.0, %v201
    %v203 = vmul.f32 %v202, 2.0
    %v204 = vsub.f32 %v203, 1.0
    %v205 = vmul.f32 %v202, %v157
    %207 = vrot.lane.b32.xlu0 %v204, 64
    %v208 = vpop.permute.xlu0 %207
    %v210 = vmul.f32 %v202, %v208
    %212 = vrot.lane.b32.xlu0 %v210, 32
    %v213 = vpop.permute.xlu0 %212
    %v215 = vadd.f32 %v205, %v213
    %v216 = vtanh.pop %v215
    %218 = vrot.lane.b32.xlu0 %v216, 64
    %v219 = vpop.permute.xlu0 %218
    %v221 = vmul.f32 %v202, %v219
    %vm222 = vcmp.gt.f32.partialorder %v25, 1.0
    %v223 = vsel %vm222, 1, 0
    %224 = vset.pattern.permute.xlu0 16
    %225 = vperm.xlu0 %224, %v223
    %v226 = vpop.permute.xlu0 %225
    %vm227 = vcmp.eq.s32.totalorder %v226, 1
    %v228 = vsel %vm227, %v221, %v156
    %v229 = vsel %vm227, %v215, %v157
    %231 = vrot.lane.b32.xlu0 %v228, 32
    %v232 = vpop.permute.xlu0 %231
    %v233 = vsel %vm87, %v232, 0
    %235 = vmatpush.msra.mxu0 0.0
    %236 = vmatpush.msra.mxu0 0.0
    %237 = vmatpush.msra.mxu0 0.0
    %238 = vmatpush.msra.mxu0 0.0
    %239 = vmatpush.msra.mxu0 0.0
    %240 = vmatpush.msra.mxu0 0.0
    %241 = vmatpush.msra.mxu0 0.0
    %242 = vmatpush.msra.mxu0 0.0
    %243 = vmatpush.msra.mxu0 0.0
    %244 = vmatpush.msra.mxu0 0.0
    %245 = vmatpush.msra.mxu0 0.0
    %246 = vmatpush.msra.mxu0 0.0
    %247 = vmatpush.msra.mxu0 %v23
    %248 = vmatpush.msra.mxu0 %v22
    %249 = vmatpush.msra.mxu0 %v21
    %250 = vmatpush.msra.mxu0 %v20
    %251 = vmatmul.f32.gmra.mxu0 %v233
    %v252 = vpop.f32.mrf.mxu0
    %v253 = vadd.f32 0.0, %v252
    %254 = vdwg.mxu0
    %v255 = vadd.f32 %v76, %v253
    %v256 = vxor.u32 %v255, 2147483648
    %v257 = vmul.f32 %v256, 1.442695
    %v258 = vpow.pop %v257
    %v259 = vadd.f32 %v258, 1.0
    %v260 = vrcp.pop %v259
    %v261 = vmul.f32 %v259, %v260
    %v262 = vsub.f32 1.0, %v261
    %v263 = vmul.f32 %v260, %v262
    %v264 = vadd.f32 %v260, %v263
    %vm265 = vweird.f32 %v259
    %vm266 = vweird.f32 %v260
    %vm267 = vmor %vm265, %vm266
    %v268 = vsel %vm267, %v260, %v264
    %v269 = vand.u32 2147483647, %v259
    %vm270 = vcmp.eq.f32.partialorder %v269, 8.507059e+37
    %v271 = vand.u32 %v259, 2147483648
    %v272 = vor.u32 1.1754944e-38, %v271
    %v273 = vsel %vm270, %v272, %v268
    %v274 = vmul.f32 1.0, %v273
    %v275 = vmul.f32 %v274, 2.0
    %v276 = vsub.f32 %v275, 1.0
    %v277 = vmul.f32 %v274, %v229
    %279 = vrot.lane.b32.xlu0 %v276, 64
    %v280 = vpop.permute.xlu0 %279
    %v282 = vmul.f32 %v274, %v280
    %284 = vrot.lane.b32.xlu0 %v282, 32
    %v285 = vpop.permute.xlu0 %284
    %v287 = vadd.f32 %v277, %v285
    %v288 = vtanh.pop %v287
    %290 = vrot.lane.b32.xlu0 %v288, 64
    %v291 = vpop.permute.xlu0 %290
    %v293 = vmul.f32 %v274, %v291
    %vm294 = vcmp.gt.f32.partialorder %v25, 2.0
    %v295 = vsel %vm294, 1, 0
    %296 = vset.pattern.permute.xlu0 16
    %297 = vperm.xlu0 %296, %v295
    %v298 = vpop.permute.xlu0 %297
    %vm299 = vcmp.eq.s32.totalorder %v298, 1
    %v300 = vsel %vm299, %v293, %v228
    %v301 = vsel %vm299, %v287, %v229
    %303 = vrot.lane.b32.xlu0 %v300, 32
    %v304 = vpop.permute.xlu0 %303
    %v305 = vsel %vm87, %v304, 0
    %307 = vmatpush.msra.mxu0 0.0
    %308 = vmatpush.msra.mxu0 0.0
    %309 = vmatpush.msra.mxu0 0.0
    %310 = vmatpush.msra.mxu0 0.0
    %311 = vmatpush.msra.mxu0 0.0
    %312 = vmatpush.msra.mxu0 0.0
    %313 = vmatpush.msra.mxu0 0.0
    %314 = vmatpush.msra.mxu0 0.0
    %315 = vmatpush.msra.mxu0 0.0
    %316 = vmatpush.msra.mxu0 0.0
    %317 = vmatpush.msra.mxu0 0.0
    %318 = vmatpush.msra.mxu0 0.0
    %319 = vmatpush.msra.mxu0 %v23
    %320 = vmatpush.msra.mxu0 %v22
    %321 = vmatpush.msra.mxu0 %v21
    %322 = vmatpush.msra.mxu0 %v20
    %323 = vmatmul.f32.gmra.mxu0 %v305
    %v324 = vpop.f32.mrf.mxu0
    %v325 = vadd.f32 0.0, %v324
    %326 = vdwg.mxu0
    %v327 = vadd.f32 %v79, %v325
    %v328 = vxor.u32 %v327, 2147483648
    %v329 = vmul.f32 %v328, 1.442695
    %v330 = vpow.pop %v329
    %v331 = vadd.f32 %v330, 1.0
    %v332 = vrcp.pop %v331
    %v333 = vmul.f32 %v331, %v332
    %v334 = vsub.f32 1.0, %v333
    %v335 = vmul.f32 %v332, %v334
    %v336 = vadd.f32 %v332, %v335
    %vm337 = vweird.f32 %v331
    %vm338 = vweird.f32 %v332
    %vm339 = vmor %vm337, %vm338
    %v340 = vsel %vm339, %v332, %v336
    %v341 = vand.u32 2147483647, %v331
    %vm342 = vcmp.eq.f32.partialorder %v341, 8.507059e+37
    %v343 = vand.u32 %v331, 2147483648
    %v344 = vor.u32 1.1754944e-38, %v343
    %v345 = vsel %vm342, %v344, %v340
    %v346 = vmul.f32 1.0, %v345
    %v347 = vmul.f32 %v346, 2.0
    %v348 = vsub.f32 %v347, 1.0
    %v349 = vmul.f32 %v346, %v301
    %351 = vrot.lane.b32.xlu0 %v348, 64
    %v352 = vpop.permute.xlu0 %351
    %v354 = vmul.f32 %v346, %v352
    %356 = vrot.lane.b32.xlu0 %v354, 32
    %v357 = vpop.permute.xlu0 %356
    %v359 = vadd.f32 %v349, %v357
    %v360 = vtanh.pop %v359
    %362 = vrot.lane.b32.xlu0 %v360, 64
    %v363 = vpop.permute.xlu0 %362
    %v365 = vmul.f32 %v346, %v363
    %vm366 = vcmp.gt.f32.partialorder %v25, 3.0
    %v367 = vsel %vm366, 1, 0
    %368 = vset.pattern.permute.xlu0 16
    %369 = vperm.xlu0 %368, %v367
    %v370 = vpop.permute.xlu0 %369
    %vm371 = vcmp.eq.s32.totalorder %v370, 1
    %v372 = vsel %vm371, %v365, %v300
    %v373 = vsel %vm371, %v359, %v301
    %375 = vrot.lane.b32.xlu0 %v372, 32
    %v376 = vpop.permute.xlu0 %375
    %v377 = vsel %vm87, %v376, 0
    %379 = vmatpush.msra.mxu0 0.0
    %380 = vmatpush.msra.mxu0 0.0
    %381 = vmatpush.msra.mxu0 0.0
    %382 = vmatpush.msra.mxu0 0.0
    %383 = vmatpush.msra.mxu0 0.0
    %384 = vmatpush.msra.mxu0 0.0
    %385 = vmatpush.msra.mxu0 0.0
    %386 = vmatpush.msra.mxu0 0.0
    %387 = vmatpush.msra.mxu0 0.0
    %388 = vmatpush.msra.mxu0 0.0
    %389 = vmatpush.msra.mxu0 0.0
    %390 = vmatpush.msra.mxu0 0.0
    %391 = vmatpush.msra.mxu0 %v23
    %392 = vmatpush.msra.mxu0 %v22
    %393 = vmatpush.msra.mxu0 %v21
    %394 = vmatpush.msra.mxu0 %v20
    %395 = vmatmul.f32.gmra.mxu0 %v377
    %v396 = vpop.f32.mrf.mxu0
    %v397 = vadd.f32 0.0, %v396
    %398 = vdwg.mxu0
    %v399 = vadd.f32 %v82, %v397
    %v400 = vxor.u32 %v399, 2147483648
    %v401 = vmul.f32 %v400, 1.442695
    %v402 = vpow.pop %v401
    %v403 = vadd.f32 %v402, 1.0
    %v404 = vrcp.pop %v403
    %v405 = vmul.f32 %v403, %v404
    %v406 = vsub.f32 1.0, %v405
    %v407 = vmul.f32 %v404, %v406
    %v408 = vadd.f32 %v404, %v407
    %vm409 = vweird.f32 %v403
    %vm410 = vweird.f32 %v404
    %vm411 = vmor %vm409, %vm410
    %v412 = vsel %vm411, %v404, %v408
    %v413 = vand.u32 2147483647, %v403
    %vm414 = vcmp.eq.f32.partialorder %v413, 8.507059e+37
    %v415 = vand.u32 %v403, 2147483648
    %v416 = vor.u32 1.1754944e-38, %v415
    %v417 = vsel %vm414, %v416, %v412
    %v418 = vmul.f32 1.0, %v417
    %v419 = vmul.f32 %v418, 2.0
    %v420 = vsub.f32 %v419, 1.0
    %v421 = vmul.f32 %v418, %v373
    %423 = vrot.lane.b32.xlu0 %v420, 64
    %v424 = vpop.permute.xlu0 %423
    %v426 = vmul.f32 %v418, %v424
    %428 = vrot.lane.b32.xlu0 %v426, 32
    %v429 = vpop.permute.xlu0 %428
    %v431 = vadd.f32 %v421, %v429
    %v432 = vtanh.pop %v431
    %434 = vrot.lane.b32.xlu0 %v432, 64
    %v435 = vpop.permute.xlu0 %434
    %v437 = vmul.f32 %v418, %v435
    %vm438 = vcmp.gt.f32.partialorder %v25, 4.0
    %v439 = vsel %vm438, 1, 0
    %440 = vset.pattern.permute.xlu0 16
    %441 = vperm.xlu0 %440, %v439
    %v442 = vpop.permute.xlu0 %441
    %vm443 = vcmp.eq.s32.totalorder %v442, 1
    %v444 = vsel %vm443, %v437, %v372
    %v445 = vsel %vm443, %v431, %v373
    %447 = vrot.lane.b32.xlu0 %v444, 32
    %v448 = vpop.permute.xlu0 %447
    %v449 = vsel %vm87, %v448, 0
    %451 = vmatpush.msra.mxu0 0.0
    %452 = vmatpush.msra.mxu0 0.0
    %453 = vmatpush.msra.mxu0 0.0
    %454 = vmatpush.msra.mxu0 0.0
    %455 = vmatpush.msra.mxu0 0.0
    %456 = vmatpush.msra.mxu0 0.0
    %457 = vmatpush.msra.mxu0 0.0
    %458 = vmatpush.msra.mxu0 0.0
    %459 = vmatpush.msra.mxu0 0.0
    %460 = vmatpush.msra.mxu0 0.0
    %461 = vmatpush.msra.mxu0 0.0
    %462 = vmatpush.msra.mxu0 0.0
    %463 = vmatpush.msra.mxu0 %v23
    %464 = vmatpush.msra.mxu0 %v22
    %465 = vmatpush.msra.mxu0 %v21
    %466 = vmatpush.msra.mxu0 %v20
    %467 = vmatmul.f32.gmra.mxu0 %v449
    %v468 = vpop.f32.mrf.mxu0
    %v469 = vadd.f32 0.0, %v468
    %470 = vdwg.mxu0
    %v471 = vadd.f32 %v85, %v469
    %v472 = vxor.u32 %v471, 2147483648
    %v473 = vmul.f32 %v472, 1.442695
    %v474 = vpow.pop %v473
    %v475 = vadd.f32 %v474, 1.0
    %v476 = vrcp.pop %v475
    %v477 = vmul.f32 %v475, %v476
    %v478 = vsub.f32 1.0, %v477
    %v479 = vmul.f32 %v476, %v478
    %v480 = vadd.f32 %v476, %v479
    %vm481 = vweird.f32 %v475
    %vm482 = vweird.f32 %v476
    %vm483 = vmor %vm481, %vm482
    %v484 = vsel %vm483, %v476, %v480
    %v485 = vand.u32 2147483647, %v475
    %vm486 = vcmp.eq.f32.partialorder %v485, 8.507059e+37
    %v487 = vand.u32 %v475, 2147483648
    %v488 = vor.u32 1.1754944e-38, %v487
    %v489 = vsel %vm486, %v488, %v484
    %v490 = vmul.f32 1.0, %v489
    %v491 = vmul.f32 %v490, 2.0
    %v492 = vsub.f32 %v491, 1.0
    %v493 = vmul.f32 %v490, %v445
    %495 = vrot.lane.b32.xlu0 %v492, 64
    %v496 = vpop.permute.xlu0 %495
    %v498 = vmul.f32 %v490, %v496
    %500 = vrot.lane.b32.xlu0 %v498, 32
    %v501 = vpop.permute.xlu0 %500
    %v503 = vadd.f32 %v493, %v501
    %v504 = vtanh.pop %v503
    %506 = vrot.lane.b32.xlu0 %v504, 64
    %v507 = vpop.permute.xlu0 %506
    %v509 = vmul.f32 %v490, %v507
    %vm510 = vcmp.gt.f32.partialorder %v25, 5.0
    %v511 = vsel %vm510, 1, 0
    %512 = vset.pattern.permute.xlu0 16
    %513 = vperm.xlu0 %512, %v511
    %v514 = vpop.permute.xlu0 %513
    %vm515 = vcmp.eq.s32.totalorder %v514, 1
    %v516 = vsel %vm515, %v509, %v444
    %v517 = vsel %vm515, %v503, %v445
    %v518 = vld [vmem:[%s2] sm:$0xff]
    %v519 = vld [vmem:[%s2 + $0x8] sm:$0xff]
    %v520 = vld [vmem:[%s2 + $0x10] sm:$0xff]
    %v521 = vld [vmem:[%s2 + $0x18] sm:$0xff]
    %v522 = vld [vmem:[%s2 + $0x20] sm:$0x1]
    %v523 = vperm.slane %v522, 0
    %525 = vrot.lane.b32.xlu0 %v516, 32
    %v526 = vpop.permute.xlu0 %525
    %v527 = vsel %vm87, %v526, 0
    %529 = vmatpush.msra.mxu0 0.0
    %530 = vmatpush.msra.mxu0 0.0
    %531 = vmatpush.msra.mxu0 0.0
    %532 = vmatpush.msra.mxu0 0.0
    %533 = vmatpush.msra.mxu0 0.0
    %534 = vmatpush.msra.mxu0 0.0
    %535 = vmatpush.msra.mxu0 0.0
    %536 = vmatpush.msra.mxu0 0.0
    %537 = vmatpush.msra.mxu0 0.0
    %538 = vmatpush.msra.mxu0 0.0
    %539 = vmatpush.msra.mxu0 0.0
    %540 = vmatpush.msra.mxu0 0.0
    %541 = vmatpush.msra.mxu0 %v521
    %542 = vmatpush.msra.mxu0 %v520
    %543 = vmatpush.msra.mxu0 %v519
    %544 = vmatpush.msra.mxu0 %v518
    %545 = vmatmul.f32.gmra.mxu0 %v527
    %v546 = vpop.f32.mrf.mxu0
    %v547 = vadd.f32 %v523, %v546
    %548 = vdwg.mxu0
    %v549 = vmul.f32 %v547, 0.5
    %v550 = vmul.f32 %v549, 1.442695
    %v551 = vpow.pop %v550
    %553 = vrot.lane.b32.xlu0 %v551, 112
    %v554 = vpop.permute.xlu0 %553
    %v556 = vmul.f32 %v25, %v554
    %v557 = vadd.f32 %v556, %v547
    %559 = vrot.lane.b32.xlu0 %v547, 16
    %v560 = vpop.permute.xlu0 %559
    %562 = vrot.lane.b32.xlu0 %v551, 16
    %v563 = vpop.permute.xlu0 %562
    %565 = vrot.lane.b32.xlu0 %v516, 80
    %v566 = vpop.permute.xlu0 %565
    %569 = vrot.lane.b32.xlu0 %v517, 48
    %v570 = vpop.permute.xlu0 %569
    %v572 = vsel %vm33, %v557, %v560
    %v573 = vsel %vm87, %v572, %v563
    %vm574 = vcmask 392192
    %v575 = vsel %vm574, %v573, %v566
    %vm576 = vcmask 654336
    %v577 = vsel %vm576, %v575, %v570
    %vm578 = vcmask 916480
    %v579 = vsel %vm578, %v577, 0.0
    %580 = vst [vmem:[#allocation2] sm:$0xff] %v579
    // Predicated region
    $region18: #{tpu_custom_call.1} parent=1 // pred_check
      _
    $region19: #{tpu_custom_call.1} parent=1 // pred_check_branch
      %582 = sbr.rel (0) target = $region21
    $region20: #{tpu_custom_call.1} parent=1 // pred_region
      %584 = vsyncadd [#allocation3], 0
      %s586 = sshll.u32 [#allocation2], 4
      %s587 = int_to_ptr.vmem [resolvable:$true] %s586
      %s588 = sshll.u32 %s4, 4
      %s589 = int_to_ptr.hbm [resolvable:$true] %s588
      %591 = dma.vmem_to_hbm [thread:$0]  %s587, 128, %s589, [#allocation3]
    $region21: #{tpu_custom_call.1} parent=1 // pred_fallthru
      _
    // Predicated region
    $region22: #{tpu_custom_call.1} parent=1 // pred_check
      _
    $region23: #{tpu_custom_call.1} parent=1 // pred_check_branch
      %593 = sbr.rel (0) target = $region25
    $region24: #{tpu_custom_call.1} parent=1 // pred_region
      %595 = dma.done [#allocation3], 128
    $region25: #{tpu_custom_call.1} parent=1 // pred_fallthru
      _
    %596 = vsyncpa [#allocation3], 1

</llo_original>
